<compile_context>
chip_gen: v6e
topology: v6e:2x2x1
jax: 0.10.0
libtpu: 0.0.40
codegen_flags: <defaults>
</compile_context>

<pallas_src>
import functools

import jax
import jax.numpy as jnp
from jax.experimental import pallas as pl
from jax.experimental.pallas import tpu as pltpu

LANES = 128
MAX_BLOCK_ROWS = 1024  # 1024*128*4B = 512 KiB per input per pipeline buffer
NUM_PARTS = 2          # megacore split (v7x has 2 TCs); harmless on v5e/v6e


def _hybrid_norm_kernel(pred_ref, true_ref, out_ref, acc_ref, *,
                        inv_delta_sq, total_rows, block_rows,
                        blocks_per_part, need_mask):
    b = pl.program_id(1)  # reduction ("arbitrary") axis

    @pl.when(b == 0)
    def _():
        acc_ref[...] = jnp.zeros_like(acc_ref)

    r = pred_ref[...].astype(jnp.float32) - true_ref[...].astype(jnp.float32)
    h = jnp.sqrt(1.0 + (r * r) * inv_delta_sq) - 1.0  # sqrt -> EUP, rest VPU

    if need_mask:
        # Mask rows past the logical end of the slab (partial last block).
        p = pl.program_id(0)
        block_idx = p * blocks_per_part + b
        row_idx = block_idx * block_rows + jax.lax.broadcasted_iota(
            jnp.int32, h.shape, 0)
        h = jnp.where(row_idx < total_rows, h, 0.0)

    acc_ref[...] += h  # pure VPU accumulate; hides under the streaming DMA

    @pl.when(b == pl.num_programs(1) - 1)
    def _():
        # Single cross-lane reduction per part; one lane-dense (8,128) store.
        part_sum = jnp.sum(acc_ref[...])
        out_ref[...] = jnp.full(out_ref.shape, part_sum, dtype=jnp.float32)


def hybrid_norm(y_pred, y_true, delta=10.0):
    assert y_pred.shape == y_true.shape
    n = y_pred.size

    pred_flat = y_pred.reshape(-1)
    true_flat = y_true.reshape(-1)

    # Pad only the <128-element tail (r == 0 on padded entries => h == 0).
    # No padding (and no extra HBM copy) when n is already a multiple of 128.
    pad = (-n) % LANES
    if pad:
        pred_flat = jnp.pad(pred_flat, (0, pad))
        true_flat = jnp.pad(true_flat, (0, pad))

    total_rows = (n + pad) // LANES
    pred2d = pred_flat.reshape(total_rows, LANES)
    true2d = true_flat.reshape(total_rows, LANES)

    # Block rows: whole slab if it fits, otherwise MAX_BLOCK_ROWS (multiple of 8).
    block_rows = total_rows if total_rows <= MAX_BLOCK_ROWS else MAX_BLOCK_ROWS
    num_blocks = pl.cdiv(total_rows, block_rows)
    num_parts = min(NUM_PARTS, num_blocks)
    blocks_per_part = pl.cdiv(num_blocks, num_parts)
    # Mask only when the grid's block coverage overshoots the real row count.
    need_mask = (num_parts * blocks_per_part * block_rows) != total_rows

    kernel = functools.partial(
        _hybrid_norm_kernel,
        inv_delta_sq=1.0 / (float(delta) * float(delta)),
        total_rows=total_rows,
        block_rows=block_rows,
        blocks_per_part=blocks_per_part,
        need_mask=need_mask,
    )

    def in_map(p, b):
        return (p * blocks_per_part + b, 0)

    out = pl.pallas_call(
        kernel,
        out_shape=jax.ShapeDtypeStruct((num_parts * 8, LANES), jnp.float32),
        grid_spec=pltpu.PrefetchScalarGridSpec(
            num_scalar_prefetch=0,
            grid=(num_parts, blocks_per_part),
            in_specs=[
                pl.BlockSpec((block_rows, LANES), in_map),
                pl.BlockSpec((block_rows, LANES), in_map),
            ],
            out_specs=pl.BlockSpec((8, LANES), lambda p, b: (p, 0)),
            scratch_shapes=[pltpu.VMEM((block_rows, LANES), jnp.float32)],
        ),
        compiler_params=pltpu.CompilerParams(
            dimension_semantics=("parallel", "arbitrary"),
        ),
    )(pred2d, true2d)

    # Each part broadcast its partial sum over its (8, LANES) tile; pick one
    # representative element per part and sum the partials.
    return jnp.sum(out[0::8, 0])


if __name__ == "__main__":
    key = jax.random.PRNGKey(0)
    k1, k2 = jax.random.split(key)

    # Small shapes consistent with an NCHW residual tensor.
    shape = (2, 4, 16, 16)
    y_pred = jax.random.normal(k1, shape, dtype=jnp.float32)
    y_true = jax.random.normal(k2, shape, dtype=jnp.float32)

    delta = 10.0
    loss = hybrid_norm(y_pred, y_true, delta=delta)
    loss = jax.block_until_ready(loss)

    # Reference check in plain JAX.
    r = y_pred - y_true
    ref = jnp.sum(jnp.sqrt(1.0 + (r / delta) ** 2) - 1.0)
    assert jnp.allclose(loss, ref, rtol=1e-5, atol=1e-5), (loss, ref)

    print("KERNEL_OK")
</pallas_src>

<mosaic_0001>
module attributes {stable_mosaic.version = 11 : i64} {
  func.func @_hybrid_norm_kernel(%arg0: i32, %arg1: i32, %arg2: memref<16x128xf32, #tpu.memory_space<vmem>>, %arg3: memref<16x128xf32, #tpu.memory_space<vmem>>, %arg4: memref<8x128xf32, #tpu.memory_space<vmem>>, %arg5: memref<16x128xf32, #tpu.memory_space<vmem>>) attributes {dimension_semantics = [#tpu.dimension_semantics<parallel>, #tpu.dimension_semantics<arbitrary>], iteration_bounds = array<i64: 1, 1>, scalar_prefetch = 0 : i64, scratch_operands = 1 : i64, tpu.core_type = #tpu.core_type<tc>, window_params = [{transform_indices = @transform_0, window_bounds = array<i64: 16, 128>}, {transform_indices = @transform_1, window_bounds = array<i64: 16, 128>}, {transform_indices = @transform_2, window_bounds = array<i64: 8, 128>}]} {
    %c0_i32 = arith.constant 0 : i32
    %0 = arith.cmpi eq, %arg1, %c0_i32 : i32
    %1 = arith.extui %0 : i1 to i32
    %c0_i32_0 = arith.constant 0 : i32
    %2 = arith.cmpi ne, %1, %c0_i32_0 : i32
    scf.if %2 {
      %cst_12 = arith.constant 0.000000e+00 : f32
      %20 = vector.broadcast %cst_12 : f32 to vector<16x128xf32>
      %c0_13 = arith.constant 0 : index
      %c0_14 = arith.constant 0 : index
      %21 = vector.load %arg5[%c0_13, %c0_14] : memref<16x128xf32, #tpu.memory_space<vmem>>, vector<16x128xf32>
      tpu.vector_store %arg5[%c0_13, %c0_14], %20 {strides = array<i32>} : memref<16x128xf32, #tpu.memory_space<vmem>>, vector<16x128xf32>,
    } else {
    }
    %c0 = arith.constant 0 : index
    %c0_1 = arith.constant 0 : index
    %3 = vector.load %arg2[%c0, %c0_1] : memref<16x128xf32, #tpu.memory_space<vmem>>, vector<16x128xf32>
    %c0_2 = arith.constant 0 : index
    %c0_3 = arith.constant 0 : index
    %4 = vector.load %arg3[%c0_2, %c0_3] : memref<16x128xf32, #tpu.memory_space<vmem>>, vector<16x128xf32>
    %5 = arith.subf %3, %4 : vector<16x128xf32>
    %6 = arith.mulf %5, %5 : vector<16x128xf32>
    %cst = arith.constant 0.00999999977 : f32
    %7 = vector.broadcast %cst : f32 to vector<16x128xf32>
    %8 = arith.mulf %6, %7 : vector<16x128xf32>
    %cst_4 = arith.constant 1.000000e+00 : f32
    %9 = vector.broadcast %cst_4 : f32 to vector<16x128xf32>
    %10 = arith.addf %9, %8 : vector<16x128xf32>
    %11 = math.sqrt %10 : vector<16x128xf32>
    %cst_5 = arith.constant 1.000000e+00 : f32
    %12 = vector.broadcast %cst_5 : f32 to vector<16x128xf32>
    %13 = arith.subf %11, %12 : vector<16x128xf32>
    %c0_6 = arith.constant 0 : index
    %c0_7 = arith.constant 0 : index
    %14 = vector.load %arg5[%c0_6, %c0_7] : memref<16x128xf32, #tpu.memory_space<vmem>>, vector<16x128xf32>
    %15 = arith.addf %14, %13 : vector<16x128xf32>
    %c0_8 = arith.constant 0 : index
    %c0_9 = arith.constant 0 : index
    %16 = vector.load %arg5[%c0_8, %c0_9] : memref<16x128xf32, #tpu.memory_space<vmem>>, vector<16x128xf32>
    tpu.vector_store %arg5[%c0_8, %c0_9], %15 {strides = array<i32>} : memref<16x128xf32, #tpu.memory_space<vmem>>, vector<16x128xf32>,
    %c0_i32_10 = arith.constant 0 : i32
    %17 = arith.cmpi eq, %arg1, %c0_i32_10 : i32
    %18 = arith.extui %17 : i1 to i32
    %c0_i32_11 = arith.constant 0 : i32
    %19 = arith.cmpi ne, %18, %c0_i32_11 : i32
    scf.if %19 {
      %c0_12 = arith.constant 0 : index
      %c0_13 = arith.constant 0 : index
      %20 = vector.load %arg5[%c0_12, %c0_13] : memref<16x128xf32, #tpu.memory_space<vmem>>, vector<16x128xf32>
      %21 = vector.shape_cast %20 : vector<16x128xf32> to vector<1x16x128xf32>
      %cst_14 = arith.constant dense<0.000000e+00> : vector<1xf32>
      %22 = vector.multi_reduction <add>, %21, %cst_14 [1, 2] : vector<1x16x128xf32> to vector<1xf32>
      %23 = vector.shape_cast %22 : vector<1xf32> to vector<1x1x1xf32>
      %24 = vector.extract %23[0, 0, 0] : f32 from vector<1x1x1xf32>
      %25 = vector.broadcast %24 : f32 to vector<8x128xf32>
      %c0_15 = arith.constant 0 : index
      %c0_16 = arith.constant 0 : index
      %26 = vector.load %arg4[%c0_15, %c0_16] : memref<8x128xf32, #tpu.memory_space<vmem>>, vector<8x128xf32>
      tpu.vector_store %arg4[%c0_15, %c0_16], %25 {strides = array<i32>} : memref<8x128xf32, #tpu.memory_space<vmem>>, vector<8x128xf32>,
    } else {
    }
    return
  }
  func.func @transform_0(%arg0: i32, %arg1: i32) -> (i32, i32) {
    %c1_i32 = arith.constant 1 : i32
    %0 = arith.muli %arg0, %c1_i32 : i32
    %1 = arith.addi %0, %arg1 : i32
    %c0_i32 = arith.constant 0 : i32
    %c0_i32_0 = arith.constant 0 : i32
    return %1, %c0_i32 : i32, i32
  }
  func.func @transform_1(%arg0: i32, %arg1: i32) -> (i32, i32) {
    %c1_i32 = arith.constant 1 : i32
    %0 = arith.muli %arg0, %c1_i32 : i32
    %1 = arith.addi %0, %arg1 : i32
    %c0_i32 = arith.constant 0 : i32
    %c0_i32_0 = arith.constant 0 : i32
    return %1, %c0_i32 : i32, i32
  }
  func.func @transform_2(%arg0: i32, %arg1: i32) -> (i32, i32) {
    %c0_i32 = arith.constant 0 : i32
    %c0_i32_0 = arith.constant 0 : i32
    return %arg0, %c0_i32 : i32, i32
  }
}

</mosaic_0001>

<llo_original>
// kernel: tpu_custom_call.1
$region0: #{tpu_custom_call.1}
  #allocation0 [shape = 'u32[]', space=smem, size = 0x4, offset = 0x4, fixed_abs, tag = 'smem constant byte address 0x4 - core index']
  #allocation1 [shape = 'u32[144,128]{1,0:T(1,128)}', space=vmem, size = 0x12000, scoped, tag = 'internal scratch']
  #allocation2 [shape = 'f32[16,128]{1,0:T(8,128)}', space=vmem, size = 0x2000, scoped, tag = 'scratch operand']
  %s0 = inlined_call_operand.hbm [shape: f32[16,128], index: 0, kind: input, shape index: {}]
  %s1 = inlined_call_operand.hbm [shape: f32[16,128], index: 1, kind: input, shape index: {}]
  %s2 = inlined_call_operand.hbm [shape: f32[8,128], index: 2, kind: output, shape index: {}]
  %s3 = sld [smem:[#allocation0]]
  $region34: #{tpu_custom_call.1} parent=0
    _
  %s5 = ssub.s32 1, %s3
  %s6 = scalar_select 0, %s5, %s3
  $region1: #{tpu_custom_call.1} parent=0
    #allocation3 [shape = 'u8[8192]{0}', space=vmem, size = 0x2000, scoped, tag = 'input window, operand 0, single buffered']
    #allocation4 [shape = 's32[1]{0}', space=sflag, size = 0x4, scoped, tag = 'scoped memory for tpu_custom_call.1']
    #allocation5 [shape = 's32[1]{0}', space=sflag, size = 0x4, scoped, tag = 'scoped memory for tpu_custom_call.1']
    #allocation6 [shape = 'u8[8192]{0}', space=vmem, size = 0x2000, scoped, tag = 'input window, operand 1, single buffered']
    #allocation7 [shape = 's32[1]{0}', space=sflag, size = 0x4, scoped, tag = 'scoped memory for tpu_custom_call.1']
    #allocation8 [shape = 'u8[4096]{0}', space=vmem, size = 0x1000, scoped, tag = 'output window, operand 0, single buffered']
    %7 = vsyncpa [#allocation4], 0
    %8 = vsyncpa [#allocation7], 0
    %9 = vsyncpa [#allocation5], 0
    // Predicated region
    $region2: #{tpu_custom_call.1} parent=1 // pred_check
      _
    $region3: #{tpu_custom_call.1} parent=1 // pred_check_branch
      %11 = sbr.rel (0) target = $region5
    $region4: #{tpu_custom_call.1} parent=1 // pred_region
      %s12 = sadd.s32 0, 0
      %s13 = smul.u32 2, %s12
      %s15 = ssub.s32 256, 256
      %16 = vsyncadd [#allocation4], %s15
      %s17 = smul.addr %s13, 128
      %s18 = scalar_lea.hbm %s0, %s17
      %s19 = sshll.u32 [#allocation3], 4
      %s20 = int_to_ptr.vmem [resolvable:$true] %s19
      %25 = dma.hbm_to_vmem [thread:$0]  %s18, 256, %s20, [#allocation4], 128, 128, 8
    $region5: #{tpu_custom_call.1} parent=1 // pred_fallthru
      _
    // Predicated region
    $region6: #{tpu_custom_call.1} parent=1 // pred_check
      _
    $region7: #{tpu_custom_call.1} parent=1 // pred_check_branch
      %27 = sbr.rel (0) target = $region9
    $region8: #{tpu_custom_call.1} parent=1 // pred_region
      %s28 = sadd.s32 0, 0
      %s29 = smul.u32 2, %s28
      %s31 = ssub.s32 256, 256
      %32 = vsyncadd [#allocation7], %s31
      %s33 = smul.addr %s29, 128
      %s34 = scalar_lea.hbm %s1, %s33
      %s35 = sshll.u32 [#allocation6], 4
      %s36 = int_to_ptr.vmem [resolvable:$true] %s35
      %41 = dma.hbm_to_vmem [thread:$0]  %s34, 256, %s36, [#allocation7], 128, 128, 8
    $region9: #{tpu_custom_call.1} parent=1 // pred_fallthru
      _
    // Predicated region
    $region10: #{tpu_custom_call.1} parent=1 // pred_check
      _
    $region11: #{tpu_custom_call.1} parent=1 // pred_check_branch
      %43 = sbr.rel (0) target = $region13
    $region12: #{tpu_custom_call.1} parent=1 // pred_region
      %44 = dma.done [#allocation4], 256
    $region13: #{tpu_custom_call.1} parent=1 // pred_fallthru
      _
    // Predicated region
    $region14: #{tpu_custom_call.1} parent=1 // pred_check
      _
    $region15: #{tpu_custom_call.1} parent=1 // pred_check_branch
      %46 = sbr.rel (0) target = $region17
    $region16: #{tpu_custom_call.1} parent=1 // pred_region
      %47 = dma.done [#allocation7], 256
    $region17: #{tpu_custom_call.1} parent=1 // pred_fallthru
      _
    %s48 = sadd.s32 0, 0
    %s49 = smul.u32 2, %s48
    %s50 = sadd.s32 0, 0
    %s51 = smul.u32 2, %s50
    %p52 = scmp.eq.s32.totalorder 0, 0
    // Predicated region
    $region18: #{tpu_custom_call.1} parent=1 // pred_check
      %p53 = pneg %p52
    $region19: #{tpu_custom_call.1} parent=1 // pred_check_branch
      %55 = sbr.rel (%p53) target = $region21
    $region20: #{tpu_custom_call.1} parent=1 // pred_region
      %56 = vst [vmem:[#allocation2] sm:$0xff] 0.0
      %57 = vst [vmem:[#allocation2 + $0x8] sm:$0xff] 0.0
    $region21: #{tpu_custom_call.1} parent=1 // pred_fallthru
      _
    %v58 = vld [vmem:[#allocation3] sm:$0xff]
    %v59 = vld [vmem:[#allocation3 + $0x8] sm:$0xff]
    %v60 = vld [vmem:[#allocation6] sm:$0xff]
    %v61 = vld [vmem:[#allocation6 + $0x8] sm:$0xff]
    %v62 = vsub.f32 %v58, %v60
    %v63 = vsub.f32 %v59, %v61
    %v64 = vmul.f32 %v62, %v62
    %v65 = vmul.f32 %v63, %v63
    %v66 = vmul.f32 %v64, 0.01
    %v67 = vmul.f32 %v65, 0.01
    %v68 = vadd.f32 %v66, 1.0
    %v69 = vadd.f32 %v67, 1.0
    %v70 = vrsqrt.pop %v68
    %v71 = vmul.f32 %v68, %v70
    %vm72 = vcmp.eq.f32.partialorder %v68, inf
    %v73 = vsel %vm72, %v68, %v71
    %vm74 = vcmp.eq.f32.partialorder %v68, 0.0
    %v75 = vand.u32 %v68, 2147483648
    %v76 = vsel %vm74, %v75, %v73
    %v77 = vrsqrt.pop %v69
    %v78 = vmul.f32 %v69, %v77
    %vm79 = vcmp.eq.f32.partialorder %v69, inf
    %v80 = vsel %vm79, %v69, %v78
    %vm81 = vcmp.eq.f32.partialorder %v69, 0.0
    %v82 = vand.u32 %v69, 2147483648
    %v83 = vsel %vm81, %v82, %v80
    %v84 = vsub.f32 %v76, 1.0
    %v85 = vsub.f32 %v83, 1.0
    %v86 = vld [vmem:[#allocation2] sm:$0xff]
    %v87 = vld [vmem:[#allocation2 + $0x8] sm:$0xff]
    %v88 = vadd.f32 %v86, %v84
    %v89 = vadd.f32 %v87, %v85
    %90 = vst [vmem:[#allocation2] sm:$0xff] %v88
    %91 = vst [vmem:[#allocation2 + $0x8] sm:$0xff] %v89
    // Predicated region
    $region22: #{tpu_custom_call.1} parent=1 // pred_check
      %p92 = pneg %p52
    $region23: #{tpu_custom_call.1} parent=1 // pred_check_branch
      %94 = sbr.rel (%p92) target = $region25
    $region24: #{tpu_custom_call.1} parent=1 // pred_region
      %v95 = vld [vmem:[#allocation2] sm:$0xff]
      %v96 = vld [vmem:[#allocation2 + $0x8] sm:$0xff]
      %v97 = vadd.f32 %v95, %v96
      %98 = vadd.xlane.f32.xlu0 %v97
      %v99 = vpop.xlane.xlu0 %98
      %v100 = vrot.slane %v99, 4
      %v101 = vadd.f32 %v99, %v100
      %v102 = vrot.slane %v101, 2
      %v103 = vadd.f32 %v101, %v102
      %v104 = vrot.slane %v103, 1
      %v105 = vadd.f32 %v103, %v104
      %s106 = vtos %v105
      %v107 = vstv %s106
      %108 = vst [vmem:[#allocation8] sm:$0xff] %v107
    $region25: #{tpu_custom_call.1} parent=1 // pred_fallthru
      _
    // Predicated region
    $region26: #{tpu_custom_call.1} parent=1 // pred_check
      _
    $region27: #{tpu_custom_call.1} parent=1 // pred_check_branch
      %110 = sbr.rel (0) target = $region29
    $region28: #{tpu_custom_call.1} parent=1 // pred_region
      %s112 = ssub.s32 128, 128
      %113 = vsyncadd [#allocation5], %s112
      %s115 = sshll.u32 [#allocation8], 4
      %s116 = int_to_ptr.vmem [resolvable:$true] %s115
      %118 = dma.vmem_to_hbm [thread:$0]  %s116, 128, %s2, [#allocation5]
    $region29: #{tpu_custom_call.1} parent=1 // pred_fallthru
      _
    // Predicated region
    $region30: #{tpu_custom_call.1} parent=1 // pred_check
      _
    $region31: #{tpu_custom_call.1} parent=1 // pred_check_branch
      %120 = sbr.rel (0) target = $region33
    $region32: #{tpu_custom_call.1} parent=1 // pred_region
      %121 = dma.done [#allocation5], 128
    $region33: #{tpu_custom_call.1} parent=1 // pred_fallthru
      _
    %122 = vsyncpa [#allocation4], 1
    %123 = vsyncpa [#allocation7], 1
    %124 = vsyncpa [#allocation5], 1

</llo_original>
